<compile_context>
chip_gen: v7x
topology: tpu7x:2x2x1
jax: 0.10.0
libtpu: 0.0.40
codegen_flags: <defaults>
</compile_context>

<pallas_src>
import jax
import jax.numpy as jnp
from jax.experimental import pallas as pl
from jax.experimental.pallas import tpu as pltpu

LANES = 128        # lane width
SUBLANES = 8       # f32 sublanes per vreg
TM_MAX = 4096      # max rows per block: 4096*128*4B = 2 MiB per input block


def _make_mse_kernel(tm: int, steps_per_core: int, rows_valid: int):
    """Kernel over grid (ncores, steps_per_core); acc_ref is the (8,128)
    partial-sum output block for this core (resident across the inner axis)."""

    def kernel(p_ref, t_ref, acc_ref):
        i = pl.program_id(1)

        @pl.when(i == 0)
        def _():
            acc_ref[...] = jnp.zeros_like(acc_ref)

        d = p_ref[...].astype(jnp.float32) - t_ref[...].astype(jnp.float32)
        dd = d * d

        # Row-validity mask: kills the OOB tail of a partial last block and
        # fully masks duplicated (clamped) blocks on the extra grid steps.
        blk = pl.program_id(0) * steps_per_core + i
        row_ids = blk * tm + jax.lax.broadcasted_iota(jnp.int32, (tm, 1), 0)
        dd = jnp.where(row_ids < rows_valid, dd, 0.0)

        # Reduce (tm, 128) -> (8, 128) with pure vreg-wise adds (no XLU),
        # then accumulate into the resident output block.
        acc_ref[...] += dd.reshape(tm // SUBLANES, SUBLANES, LANES).sum(axis=0)

    return kernel


def normal_loss(prediction: jax.Array, target: jax.Array) -> jax.Array:
    """MSE loss: mean((prediction.reshape(-1) - target.reshape(-1))**2)."""
    p = prediction.reshape(-1)
    t = target.reshape(-1)
    assert p.shape == t.shape, "prediction and target must have the same size"
    n = p.shape[0]
    assert n > 0

    # Only pad (with zeros, contributing 0 to the sum) up to the minimal
    # (8, 128) f32 tile; typical NN tensor sizes hit pad == 0.
    # TODO(synk): mask sub-1024 tails fully in-kernel to avoid this rare copy.
    chunk = SUBLANES * LANES
    pad = (-n) % chunk
    if pad:
        p = jnp.pad(p, (0, pad))
        t = jnp.pad(t, (0, pad))

    rows = (n + pad) // LANES          # multiple of 8
    p2 = p.reshape(rows, LANES)        # free reshape (row-major contiguous)
    t2 = t.reshape(rows, LANES)

    tm = min(TM_MAX, rows)             # rows % 8 == 0  =>  tm % 8 == 0, tm <= rows
    nblocks = pl.cdiv(rows, tm)
    ncores = 2 if nblocks >= 2 else 1  # shard reduction across TCs (v7x)
    spc = pl.cdiv(nblocks, ncores)     # inner steps per core

    def in_map(c, i):
        # Clamp so we never request a fully out-of-bounds block; duplicated
        # blocks are zeroed by the in-kernel row mask.
        return (jnp.minimum(c * spc + i, nblocks - 1), 0)

    partials = pl.pallas_call(
        _make_mse_kernel(tm, spc, rows),
        out_shape=jax.ShapeDtypeStruct((ncores, SUBLANES, LANES), jnp.float32),
        grid_spec=pltpu.PrefetchScalarGridSpec(
            num_scalar_prefetch=0,
            grid=(ncores, spc),
            in_specs=[
                pl.BlockSpec((tm, LANES), in_map),
                pl.BlockSpec((tm, LANES), in_map),
            ],
            out_specs=pl.BlockSpec((None, SUBLANES, LANES), lambda c, i: (c, 0, 0)),
        ),
        compiler_params=pltpu.CompilerParams(
            dimension_semantics=("parallel", "arbitrary"),
            vmem_limit_bytes=32 * 1024 * 1024,
        ),
    )(p2, t2)

    # Final tiny reduction + mean over the ORIGINAL element count.
    return (jnp.sum(partials) / jnp.float32(n)).astype(jnp.float32)


if __name__ == "__main__":
    key = jax.random.PRNGKey(0)
    k1, k2 = jax.random.split(key)
    # Small NCHW-style shapes consistent with the module's forward.
    prediction = jax.random.normal(k1, (2, 4, 16, 16), dtype=jnp.float32)
    target = jax.random.normal(k2, (2, 4, 16, 16), dtype=jnp.float32)

    loss = normal_loss(prediction, target)
    jax.block_until_ready(loss)

    # Reference check in plain JAX.
    ref = jnp.mean((prediction.reshape(-1) - target.reshape(-1)) ** 2)
    assert jnp.allclose(loss, ref, rtol=1e-5, atol=1e-6), (loss, ref)

    print("KERNEL_OK")
</pallas_src>

<mosaic_0001>
module attributes {stable_mosaic.version = 11 : i64} {
  func.func @kernel(%arg0: i32, %arg1: i32, %arg2: memref<16x128xf32, #tpu.memory_space<vmem>>, %arg3: memref<16x128xf32, #tpu.memory_space<vmem>>, %arg4: memref<1x8x128xf32, #tpu.memory_space<vmem>>) attributes {dimension_semantics = [#tpu.dimension_semantics<parallel>, #tpu.dimension_semantics<arbitrary>], iteration_bounds = array<i64: 1, 1>, scalar_prefetch = 0 : i64, scratch_operands = 0 : i64, tpu.core_type = #tpu.core_type<tc>, window_params = [{transform_indices = @transform_0, window_bounds = array<i64: 16, 128>}, {transform_indices = @transform_1, window_bounds = array<i64: 16, 128>}, {transform_indices = @transform_2, window_bounds = array<i64: 1, 8, 128>}]} {
    %c0_i32 = arith.constant 0 : i32
    %0 = arith.cmpi eq, %arg1, %c0_i32 : i32
    %1 = arith.extui %0 : i1 to i32
    %c0_i32_0 = arith.constant 0 : i32
    %2 = arith.cmpi ne, %1, %c0_i32_0 : i32
    scf.if %2 {
      %cst_12 = arith.constant 0.000000e+00 : f32
      %27 = vector.broadcast %cst_12 : f32 to vector<8x128xf32>
      %c0_13 = arith.constant 0 : index
      %c0_14 = arith.constant 0 : index
      %c0_15 = arith.constant 0 : index
      %28 = vector.load %arg4[%c0_13, %c0_14, %c0_15] : memref<1x8x128xf32, #tpu.memory_space<vmem>>, vector<1x8x128xf32>
      %29 = vector.shape_cast %28 : vector<1x8x128xf32> to vector<8x128xf32>
      %30 = vector.shape_cast %27 : vector<8x128xf32> to vector<1x8x128xf32>
      tpu.vector_store %arg4[%c0_13, %c0_14, %c0_15], %30 {strides = array<i32>} : memref<1x8x128xf32, #tpu.memory_space<vmem>>, vector<1x8x128xf32>,
    } else {
    }
    %c0 = arith.constant 0 : index
    %c0_1 = arith.constant 0 : index
    %3 = vector.load %arg2[%c0, %c0_1] : memref<16x128xf32, #tpu.memory_space<vmem>>, vector<16x128xf32>
    %c0_2 = arith.constant 0 : index
    %c0_3 = arith.constant 0 : index
    %4 = vector.load %arg3[%c0_2, %c0_3] : memref<16x128xf32, #tpu.memory_space<vmem>>, vector<16x128xf32>
    %5 = arith.subf %3, %4 : vector<16x128xf32>
    %6 = arith.mulf %5, %5 : vector<16x128xf32>
    %c1_i32 = arith.constant 1 : i32
    %7 = arith.muli %arg0, %c1_i32 : i32
    %8 = arith.addi %7, %arg1 : i32
    %c16_i32 = arith.constant 16 : i32
    %9 = arith.muli %8, %c16_i32 : i32
    %10 = tpu.iota {dimensions = array<i32: 0>} : vector<16x1xi32>
    %11 = vector.broadcast %9 : i32 to vector<16x1xi32>
    %12 = arith.addi %11, %10 : vector<16x1xi32>
    %c16_i32_4 = arith.constant 16 : i32
    %13 = vector.broadcast %c16_i32_4 : i32 to vector<16x1xi32>
    %14 = arith.cmpi slt, %12, %13 : vector<16x1xi32>
    %cst = arith.constant 0.000000e+00 : f32
    %15 = vector.shape_cast %14 : vector<16x1xi1> to vector<16x1xi1>
    %16 = vector.broadcast %15 : vector<16x1xi1> to vector<16x128xi1>
    %17 = vector.broadcast %cst : f32 to vector<16x128xf32>
    %18 = arith.select %16, %6, %17 : vector<16x128xi1>, vector<16x128xf32>
    %c0_5 = arith.constant 0 : index
    %c0_6 = arith.constant 0 : index
    %c0_7 = arith.constant 0 : index
    %19 = vector.load %arg4[%c0_5, %c0_6, %c0_7] : memref<1x8x128xf32, #tpu.memory_space<vmem>>, vector<1x8x128xf32>
    %20 = vector.shape_cast %19 : vector<1x8x128xf32> to vector<8x128xf32>
    %21 = vector.shape_cast %18 : vector<16x128xf32> to vector<2x8x128xf32>
    %cst_8 = arith.constant dense<0.000000e+00> : vector<8x128xf32>
    %22 = vector.multi_reduction <add>, %21, %cst_8 [0] : vector<2x8x128xf32> to vector<8x128xf32>
    %23 = arith.addf %20, %22 : vector<8x128xf32>
    %c0_9 = arith.constant 0 : index
    %c0_10 = arith.constant 0 : index
    %c0_11 = arith.constant 0 : index
    %24 = vector.load %arg4[%c0_9, %c0_10, %c0_11] : memref<1x8x128xf32, #tpu.memory_space<vmem>>, vector<1x8x128xf32>
    %25 = vector.shape_cast %24 : vector<1x8x128xf32> to vector<8x128xf32>
    %26 = vector.shape_cast %23 : vector<8x128xf32> to vector<1x8x128xf32>
    tpu.vector_store %arg4[%c0_9, %c0_10, %c0_11], %26 {strides = array<i32>} : memref<1x8x128xf32, #tpu.memory_space<vmem>>, vector<1x8x128xf32>,
    return
  }
  func.func @transform_0(%arg0: i32, %arg1: i32) -> (i32, i32) {
    %c1_i32 = arith.constant 1 : i32
    %0 = arith.muli %arg0, %c1_i32 : i32
    %1 = arith.addi %0, %arg1 : i32
    %c0_i32 = arith.constant 0 : i32
    %2 = arith.minsi %1, %c0_i32 : i32
    %c0_i32_0 = arith.constant 0 : i32
    %c0_i32_1 = arith.constant 0 : i32
    return %2, %c0_i32_0 : i32, i32
  }
  func.func @transform_1(%arg0: i32, %arg1: i32) -> (i32, i32) {
    %c1_i32 = arith.constant 1 : i32
    %0 = arith.muli %arg0, %c1_i32 : i32
    %1 = arith.addi %0, %arg1 : i32
    %c0_i32 = arith.constant 0 : i32
    %2 = arith.minsi %1, %c0_i32 : i32
    %c0_i32_0 = arith.constant 0 : i32
    %c0_i32_1 = arith.constant 0 : i32
    return %2, %c0_i32_0 : i32, i32
  }
  func.func @transform_2(%arg0: i32, %arg1: i32) -> (i32, i32, i32) {
    %c0_i32 = arith.constant 0 : i32
    %c0_i32_0 = arith.constant 0 : i32
    %c0_i32_1 = arith.constant 0 : i32
    return %arg0, %c0_i32, %c0_i32_0 : i32, i32, i32
  }
}

</mosaic_0001>

<llo_original>
// kernel: tpu_custom_call.1
$region0: #{tpu_custom_call.1}
  #allocation0 [shape = 'u32[]', space=smem, size = 0x4, offset = 0x4, fixed_abs, tag = 'smem constant byte address 0x4 - core index']
  #allocation1 [shape = 'u32[144,128]{1,0:T(1,128)}', space=vmem, size = 0x12000, scoped, tag = 'internal scratch']
  %s0 = inlined_call_operand.hbm [shape: f32[16,128], index: 0, kind: input, shape index: {}]
  %s1 = inlined_call_operand.hbm [shape: f32[16,128], index: 1, kind: input, shape index: {}]
  %s2 = inlined_call_operand.hbm [shape: f32[1,8,128], index: 2, kind: output, shape index: {}]
  %s3 = sld [smem:[#allocation0]]
  $region30: #{tpu_custom_call.1} parent=0
    _
  %s5 = ssub.s32 1, %s3
  %s6 = scalar_select 0, %s5, %s3
  $region1: #{tpu_custom_call.1} parent=0
    #allocation2 [shape = 'u8[8192]{0}', space=vmem, size = 0x2000, scoped, tag = 'input window, operand 0, single buffered']
    #allocation3 [shape = 's32[1]{0}', space=sflag, size = 0x4, scoped, tag = 'scoped memory for tpu_custom_call.1']
    #allocation4 [shape = 's32[1]{0}', space=sflag, size = 0x4, scoped, tag = 'scoped memory for tpu_custom_call.1']
    #allocation5 [shape = 'u8[8192]{0}', space=vmem, size = 0x2000, scoped, tag = 'input window, operand 1, single buffered']
    #allocation6 [shape = 's32[1]{0}', space=sflag, size = 0x4, scoped, tag = 'scoped memory for tpu_custom_call.1']
    #allocation7 [shape = 'u8[4096]{0}', space=vmem, size = 0x1000, scoped, tag = 'output window, operand 0, single buffered']
    %7 = vsyncpa [#allocation3], 0
    %8 = vsyncpa [#allocation6], 0
    %9 = vsyncpa [#allocation4], 0
    // Predicated region
    $region2: #{tpu_custom_call.1} parent=1 // pred_check
      _
    $region3: #{tpu_custom_call.1} parent=1 // pred_check_branch
      %11 = sbr.rel (0) target = $region5
    $region4: #{tpu_custom_call.1} parent=1 // pred_region
      %s12 = sadd.s32 0, 0
      %p13 = scmp.lt.s32.totalorder %s12, 0
      %s14 = scalar_select %p13, %s12, 0
      %s15 = smul.u32 2, %s14
      %s17 = ssub.s32 256, 256
      %18 = vsyncadd [#allocation3], %s17
      %s19 = smul.addr %s15, 128
      %s20 = scalar_lea.hbm %s0, %s19
      %s21 = sshll.u32 [#allocation2], 4
      %s22 = int_to_ptr.vmem [resolvable:$true] %s21
      %27 = dma.hbm_to_vmem [thread:$0]  %s20, 256, %s22, [#allocation3], 128, 128, 8
    $region5: #{tpu_custom_call.1} parent=1 // pred_fallthru
      _
    // Predicated region
    $region6: #{tpu_custom_call.1} parent=1 // pred_check
      _
    $region7: #{tpu_custom_call.1} parent=1 // pred_check_branch
      %29 = sbr.rel (0) target = $region9
    $region8: #{tpu_custom_call.1} parent=1 // pred_region
      %s30 = sadd.s32 0, 0
      %p31 = scmp.lt.s32.totalorder %s30, 0
      %s32 = scalar_select %p31, %s30, 0
      %s33 = smul.u32 2, %s32
      %s35 = ssub.s32 256, 256
      %36 = vsyncadd [#allocation6], %s35
      %s37 = smul.addr %s33, 128
      %s38 = scalar_lea.hbm %s1, %s37
      %s39 = sshll.u32 [#allocation5], 4
      %s40 = int_to_ptr.vmem [resolvable:$true] %s39
      %45 = dma.hbm_to_vmem [thread:$0]  %s38, 256, %s40, [#allocation6], 128, 128, 8
    $region9: #{tpu_custom_call.1} parent=1 // pred_fallthru
      _
    // Predicated region
    $region10: #{tpu_custom_call.1} parent=1 // pred_check
      _
    $region11: #{tpu_custom_call.1} parent=1 // pred_check_branch
      %47 = sbr.rel (0) target = $region13
    $region12: #{tpu_custom_call.1} parent=1 // pred_region
      %48 = dma.done [#allocation3], 256
    $region13: #{tpu_custom_call.1} parent=1 // pred_fallthru
      _
    // Predicated region
    $region14: #{tpu_custom_call.1} parent=1 // pred_check
      _
    $region15: #{tpu_custom_call.1} parent=1 // pred_check_branch
      %50 = sbr.rel (0) target = $region17
    $region16: #{tpu_custom_call.1} parent=1 // pred_region
      %51 = dma.done [#allocation6], 256
    $region17: #{tpu_custom_call.1} parent=1 // pred_fallthru
      _
    %s52 = sadd.s32 0, 0
    %p53 = scmp.lt.s32.totalorder %s52, 0
    %s54 = scalar_select %p53, %s52, 0
    %s55 = smul.u32 2, %s54
    %s56 = sadd.s32 0, 0
    %p57 = scmp.lt.s32.totalorder %s56, 0
    %s58 = scalar_select %p57, %s56, 0
    %s59 = smul.u32 2, %s58
    %p60 = scmp.eq.s32.totalorder 0, 0
    // Predicated region
    $region18: #{tpu_custom_call.1} parent=1 // pred_check
      %p61 = pneg %p60
    $region19: #{tpu_custom_call.1} parent=1 // pred_check_branch
      %63 = sbr.rel (%p61) target = $region21
    $region20: #{tpu_custom_call.1} parent=1 // pred_region
      %64 = vst [vmem:[#allocation7] sm:$0xff] 0.0
    $region21: #{tpu_custom_call.1} parent=1 // pred_fallthru
      _
    %v65 = vld [vmem:[#allocation2] sm:$0xff]
    %v66 = vld [vmem:[#allocation2 + $0x8] sm:$0xff]
    %v67 = vld [vmem:[#allocation5] sm:$0xff]
    %v68 = vld [vmem:[#allocation5 + $0x8] sm:$0xff]
    %v69 = vsub.f32 %v65, %v67
    %v70 = vsub.f32 %v66, %v68
    %v71 = vmul.f32 %v69, %v69
    %v72 = vmul.f32 %v70, %v70
    %s73 = sadd.s32 0, 0
    %s74 = smul.u32 %s73, 16
    %v75 = vlaneseq
    %v76 = vshrl.u32 %v75, 7
    %v77 = vadd.s32 %v76, 8
    %v78 = vstv %s74
    %v79 = vadd.s32 %v78, %v76
    %v80 = vadd.s32 %v78, %v77
    %vm81 = vcmp.lt.s32.totalorder %v79, 16
    %vm82 = vcmp.lt.s32.totalorder %v80, 16
    %v83 = vsel %vm81, 1, 0
    %v84 = vsel %vm82, 1, 0
    %vm85 = vcmp.eq.s32.totalorder %v83, 1
    %vm86 = vcmp.eq.s32.totalorder %v84, 1
    %v87 = vsel %vm85, %v71, 0.0
    %v88 = vsel %vm86, %v72, 0.0
    %v89 = vld [vmem:[#allocation7] sm:$0xff]
    %v90 = vadd.f32 %v87, %v88
    %v91 = vadd.f32 %v89, %v90
    %92 = vst [vmem:[#allocation7] sm:$0xff] %v91
    // Predicated region
    $region22: #{tpu_custom_call.1} parent=1 // pred_check
      _
    $region23: #{tpu_custom_call.1} parent=1 // pred_check_branch
      %94 = sbr.rel (0) target = $region25
    $region24: #{tpu_custom_call.1} parent=1 // pred_region
      %s96 = ssub.s32 128, 128
      %97 = vsyncadd [#allocation4], %s96
      %s99 = sshll.u32 [#allocation7], 4
      %s100 = int_to_ptr.vmem [resolvable:$true] %s99
      %102 = dma.vmem_to_hbm [thread:$0]  %s100, 128, %s2, [#allocation4]
    $region25: #{tpu_custom_call.1} parent=1 // pred_fallthru
      _
    // Predicated region
    $region26: #{tpu_custom_call.1} parent=1 // pred_check
      _
    $region27: #{tpu_custom_call.1} parent=1 // pred_check_branch
      %104 = sbr.rel (0) target = $region29
    $region28: #{tpu_custom_call.1} parent=1 // pred_region
      %105 = dma.done [#allocation4], 128
    $region29: #{tpu_custom_call.1} parent=1 // pred_fallthru
      _
    %106 = vsyncpa [#allocation3], 1
    %107 = vsyncpa [#allocation6], 1
    %108 = vsyncpa [#allocation4], 1

</llo_original>
